<compile_context>
chip_gen: v6e
topology: v6e:2x2x1
jax: 0.10.0
libtpu: 0.0.40
codegen_flags: <defaults>
</compile_context>

<pallas_src>
import functools

import jax
import jax.numpy as jnp
from jax import lax
from jax.experimental import pallas as pl
from jax.experimental.pallas import tpu as pltpu

LANE = 128


def _vmem_capacity_bytes() -> int:
    """Best-effort per-core VMEM capacity; conservative fallback (v7x = 64 MiB)."""
    try:
        info = pltpu.get_tpu_info()
        cap = getattr(info, "vmem_capacity_bytes", None)
        if cap:
            return int(cap)
    except Exception:
        pass
    return 64 << 20


def _num_tensorcores_per_device() -> int:
    """2 TensorCores per device only on v7x; v5e/v6e are single-TC."""
    try:
        kind = jax.devices()[0].device_kind.lower()
        if "v7" in kind:
            return 2
    except Exception:
        pass
    return 1


def _wrapmodel_kernel(x_ref, w_ref, b_ref, o_ref, acc_ref, *, inv_s, ts, s_tail):
    # x_ref: (TB, C, TS)   w_ref: (C, Dp)   b_ref: (1, Dp)
    # o_ref: (TB, Dp)      acc_ref: (TB, C) f32 scratch
    k = pl.program_id(1)
    nk = pl.num_programs(1)

    @pl.when(k == 0)
    def _():
        acc_ref[...] = jnp.zeros_like(acc_ref)

    chunk = x_ref[...].astype(jnp.float32)          # (TB, C, TS)

    if s_tail:
        # The last S-chunk overhangs the real array: Pallas does not guarantee
        # zeros in the out-of-bounds region, so mask invalid lanes explicitly.
        limit = jnp.where(k == nk - 1, s_tail, ts)
        lane_idx = lax.broadcasted_iota(jnp.int32, chunk.shape, 2)
        chunk = jnp.where(lane_idx < limit, chunk, 0.0)

    # Per-chunk cross-lane reduce (XLU) into the small (TB, C) accumulator.
    # The kernel is HBM-bandwidth bound, so this hides entirely under the DMA.
    acc_ref[...] += chunk.sum(axis=-1)

    @pl.when(k == nk - 1)
    def _():
        pooled = acc_ref[...] * inv_s               # (TB, C) mean over S
        feat = jnp.dot(pooled, w_ref[...].astype(jnp.float32),
                       preferred_element_type=jnp.float32)        # (TB, Dp)
        o_ref[...] = (feat + b_ref[...].astype(jnp.float32)).astype(o_ref.dtype)


def wrap_model_forward(x: dict, params: dict, input_type: str = "video",
                       s_tile: int | None = None):
    """Pallas equivalent of WrapModel.forward: model(x['video'], input_type=...)."""
    video = x["video"]                      # (B, C, T, H, W), NCTHW like PyTorch
    B, C, T, H, W = video.shape
    S = T * H * W
    x_flat = video.reshape(B, C, S)         # reduction axis last (lane-dense)
    elt = x_flat.dtype.itemsize

    w = params["w"]                         # (C, D)
    bias = params["b"]                      # (D,)
    D = w.shape[1]

    # Pad the feature dim to a multiple of 128 -> unmasked, lane-dense vst.
    Dp = pl.cdiv(D, LANE) * LANE
    if Dp != D:
        w = jnp.pad(w, ((0, 0), (0, Dp - D)))
        bias = jnp.pad(bias, (0, Dp - D))
    bias2 = bias.reshape(1, Dp)

    # Megacore split: any even B on 2-TC chips; single block on 1-TC chips
    # (an extra serial b-loop would only add per-step overhead there).
    num_tc = _num_tensorcores_per_device()
    TB = B // 2 if (num_tc > 1 and B > 1 and B % 2 == 0) else B

    # S tile: lane-aligned, generation-aware.  Target ~12-16 MiB per stream
    # buffer so the ~0.35 us/step overhead is <5% even at v7x's 3.2 TB/s,
    # while 2x tile + params + scratch stays well inside the VMEM budget.
    if s_tile is None:
        vmem_cap = _vmem_capacity_bytes()
        target_bytes = min(16 << 20, max(4 << 20, (vmem_cap * 3) // 10))
        s_tile = max(LANE, (target_bytes // max(1, TB * C * elt)) // LANE * LANE)
    TS = max(LANE, pl.cdiv(s_tile, LANE) * LANE)
    TS = min(TS, pl.cdiv(S, LANE) * LANE)

    grid_s = pl.cdiv(S, TS)
    s_tail = S % TS                         # 0 -> no in-kernel masking needed
    grid = (B // TB, grid_s)

    tile_bytes = TB * C * TS * elt
    vmem_bytes = int(
        2 * tile_bytes                           # double-buffered S-chunk stream
        + 2 * C * Dp * w.dtype.itemsize          # weight (constant index map)
        + 2 * Dp * bias.dtype.itemsize           # bias
        + 2 * TB * Dp * 4                        # output block
        + TB * C * 4                             # f32 accumulator scratch
        + (2 << 20))                             # headroom
    vmem_bytes = max(vmem_bytes, 32 << 20)       # floor: never below the default

    cost = pl.CostEstimate(
        flops=int(B * C * S + 2 * B * C * Dp),
        transcendentals=0,
        bytes_accessed=int(B * C * S * elt + C * Dp * w.dtype.itemsize
                           + Dp * bias.dtype.itemsize + B * Dp * 4))

    kernel = functools.partial(_wrapmodel_kernel, inv_s=1.0 / float(S),
                               ts=int(TS), s_tail=int(s_tail))

    # Output is (B//TB, TB, Dp) with a squeezed leading block dim: the (8,128)
    # rule then applies to (TB, Dp) == full dims, so any TB (incl. odd) works
    # and the kernel writes a plain 2-D (TB, Dp) block with no reshape.
    out = pl.pallas_call(
        kernel,
        out_shape=jax.ShapeDtypeStruct((B // TB, TB, Dp), jnp.float32),
        grid_spec=pltpu.PrefetchScalarGridSpec(
            num_scalar_prefetch=0,
            grid=grid,
            in_specs=[
                pl.BlockSpec((TB, C, TS), lambda b, k: (b, 0, k)),
                pl.BlockSpec((C, Dp), lambda b, k: (0, 0)),
                pl.BlockSpec((1, Dp), lambda b, k: (0, 0)),
            ],
            out_specs=pl.BlockSpec((None, TB, Dp), lambda b, k: (b, 0, 0)),
            scratch_shapes=[pltpu.VMEM((TB, C), jnp.float32)],
        ),
        compiler_params=pltpu.CompilerParams(
            dimension_semantics=("parallel", "arbitrary"),
            vmem_limit_bytes=vmem_bytes),
        cost_estimate=cost,
    )(x_flat, w, bias2)

    return out.reshape(B, Dp)[:, :D]


def make_params(key, C: int, D: int):
    """Deterministic synthetic parameters for the wrapped feature head."""
    kw, kb = jax.random.split(key)
    w = jax.random.normal(kw, (C, D), dtype=jnp.float32) * 0.02
    b = jax.random.normal(kb, (D,), dtype=jnp.float32) * 0.01
    return {"w": w, "b": b}


if __name__ == "__main__":
    # Small shapes consistent with an omnivore video input: NCTHW
    B, C, T, H, W = 2, 8, 4, 16, 16
    D = 32

    key = jax.random.PRNGKey(0)
    kv, kp = jax.random.split(key)
    video = jax.random.normal(kv, (B, C, T, H, W), dtype=jnp.float32)
    x = {"video": video}
    params = make_params(kp, C, D)

    # s_tile=384 -> 3 reduction steps with a 256-wide tail chunk: exercises both
    # the pipelined accumulate path and the in-kernel tail masking (no host pad).
    out = wrap_model_forward(x, params, input_type="video", s_tile=384)
    out = jax.block_until_ready(out)

    # Reference check in plain JAX (same semantics)
    pooled_ref = video.reshape(B, C, -1).mean(axis=-1)
    ref = pooled_ref @ params["w"] + params["b"]
    assert out.shape == (B, D)
    assert jnp.allclose(out, ref, atol=1e-4, rtol=1e-4)

    print("KERNEL_OK")
</pallas_src>

<mosaic_0001>
module attributes {stable_mosaic.version = 11 : i64} {
  func.func @_wrapmodel_kernel(%arg0: i32, %arg1: i32, %arg2: memref<2x8x384xf32, #tpu.memory_space<vmem>>, %arg3: memref<8x128xf32, #tpu.memory_space<vmem>>, %arg4: memref<1x128xf32, #tpu.memory_space<vmem>>, %arg5: memref<1x2x128xf32, #tpu.memory_space<vmem>>, %arg6: memref<2x8xf32, #tpu.memory_space<vmem>>) attributes {dimension_semantics = [#tpu.dimension_semantics<parallel>, #tpu.dimension_semantics<arbitrary>], iteration_bounds = array<i64: 1, 3>, scalar_prefetch = 0 : i64, scratch_operands = 1 : i64, tpu.core_type = #tpu.core_type<tc>, window_params = [{transform_indices = @transform_0, window_bounds = array<i64: 2, 8, 384>}, {pipeline_mode = #tpu.pipeline_mode<synchronous>, transform_indices = @transform_1, window_bounds = array<i64: 8, 128>}, {pipeline_mode = #tpu.pipeline_mode<synchronous>, transform_indices = @transform_2, window_bounds = array<i64: 1, 128>}, {transform_indices = @transform_3, window_bounds = array<i64: 1, 2, 128>}]} {
    %c0_i32 = arith.constant 0 : i32
    %0 = arith.cmpi eq, %arg1, %c0_i32 : i32
    %1 = arith.extui %0 : i1 to i32
    %c0_i32_0 = arith.constant 0 : i32
    %2 = arith.cmpi ne, %1, %c0_i32_0 : i32
    scf.if %2 {
      %cst_10 = arith.constant 0.000000e+00 : f32
      %18 = vector.broadcast %cst_10 : f32 to vector<2x8xf32>
      %c0_11 = arith.constant 0 : index
      %c0_12 = arith.constant 0 : index
      %19 = vector.load %arg6[%c0_11, %c0_12] : memref<2x8xf32, #tpu.memory_space<vmem>>, vector<2x8xf32>
      tpu.vector_store %arg6[%c0_11, %c0_12], %18 {strides = array<i32>} : memref<2x8xf32, #tpu.memory_space<vmem>>, vector<2x8xf32>,
    } else {
    }
    %c0 = arith.constant 0 : index
    %c0_1 = arith.constant 0 : index
    %c0_2 = arith.constant 0 : index
    %3 = vector.load %arg2[%c0, %c0_1, %c0_2] : memref<2x8x384xf32, #tpu.memory_space<vmem>>, vector<2x8x384xf32>
    %c2_i32 = arith.constant 2 : i32
    %4 = arith.cmpi eq, %arg1, %c2_i32 : i32
    %c256_i32 = arith.constant 256 : i32
    %c384_i32 = arith.constant 384 : i32
    %5 = arith.select %4, %c256_i32, %c384_i32 : i32
    %6 = tpu.iota {dimensions = array<i32: 2>} : vector<2x8x384xi32>
    %7 = vector.broadcast %5 : i32 to vector<2x8x384xi32>
    %8 = arith.cmpi slt, %6, %7 : vector<2x8x384xi32>
    %cst = arith.constant 0.000000e+00 : f32
    %9 = vector.broadcast %cst : f32 to vector<2x8x384xf32>
    %10 = arith.select %8, %3, %9 : vector<2x8x384xi1>, vector<2x8x384xf32>
    %c0_3 = arith.constant 0 : index
    %c0_4 = arith.constant 0 : index
    %11 = vector.load %arg6[%c0_3, %c0_4] : memref<2x8xf32, #tpu.memory_space<vmem>>, vector<2x8xf32>
    %cst_5 = arith.constant dense<0.000000e+00> : vector<2x8xf32>
    %12 = vector.multi_reduction <add>, %10, %cst_5 [2] : vector<2x8x384xf32> to vector<2x8xf32>
    %13 = arith.addf %11, %12 : vector<2x8xf32>
    %c0_6 = arith.constant 0 : index
    %c0_7 = arith.constant 0 : index
    %14 = vector.load %arg6[%c0_6, %c0_7] : memref<2x8xf32, #tpu.memory_space<vmem>>, vector<2x8xf32>
    tpu.vector_store %arg6[%c0_6, %c0_7], %13 {strides = array<i32>} : memref<2x8xf32, #tpu.memory_space<vmem>>, vector<2x8xf32>,
    %c2_i32_8 = arith.constant 2 : i32
    %15 = arith.cmpi eq, %arg1, %c2_i32_8 : i32
    %16 = arith.extui %15 : i1 to i32
    %c0_i32_9 = arith.constant 0 : i32
    %17 = arith.cmpi ne, %16, %c0_i32_9 : i32
    scf.if %17 {
      %c0_10 = arith.constant 0 : index
      %c0_11 = arith.constant 0 : index
      %18 = vector.load %arg6[%c0_10, %c0_11] : memref<2x8xf32, #tpu.memory_space<vmem>>, vector<2x8xf32>
      %cst_12 = arith.constant 9.765625E-4 : f32
      %19 = vector.broadcast %cst_12 : f32 to vector<2x8xf32>
      %20 = arith.mulf %18, %19 : vector<2x8xf32>
      %c0_13 = arith.constant 0 : index
      %c0_14 = arith.constant 0 : index
      %21 = vector.load %arg3[%c0_13, %c0_14] : memref<8x128xf32, #tpu.memory_space<vmem>>, vector<8x128xf32>
      %cst_15 = arith.constant dense<0.000000e+00> : vector<2x128xf32>
      %22 = tpu.matmul %20, %21, %cst_15 {dimension_numbers = #tpu.dot_dimension_numbers<[1], [0], [0], [1], [0, 0, 1, 1], [], []>} : vector<2x8xf32>, vector<8x128xf32>, vector<2x128xf32> -> vector<2x128xf32>
      %c0_16 = arith.constant 0 : index
      %c0_17 = arith.constant 0 : index
      %23 = vector.load %arg4[%c0_16, %c0_17] : memref<1x128xf32, #tpu.memory_space<vmem>>, vector<1x128xf32>
      %24 = vector.broadcast %23 : vector<1x128xf32> to vector<2x128xf32>
      %25 = arith.addf %22, %24 : vector<2x128xf32>
      %c0_18 = arith.constant 0 : index
      %c0_19 = arith.constant 0 : index
      %c0_20 = arith.constant 0 : index
      %26 = vector.load %arg5[%c0_18, %c0_19, %c0_20] : memref<1x2x128xf32, #tpu.memory_space<vmem>>, vector<1x2x128xf32>
      %27 = vector.shape_cast %26 : vector<1x2x128xf32> to vector<2x128xf32>
      %28 = vector.shape_cast %25 : vector<2x128xf32> to vector<1x2x128xf32>
      tpu.vector_store %arg5[%c0_18, %c0_19, %c0_20], %28 {strides = array<i32>} : memref<1x2x128xf32, #tpu.memory_space<vmem>>, vector<1x2x128xf32>,
    } else {
    }
    return
  }
  func.func @transform_0(%arg0: i32, %arg1: i32) -> (i32, i32, i32) {
    %c0_i32 = arith.constant 0 : i32
    %c0_i32_0 = arith.constant 0 : i32
    return %arg0, %c0_i32, %arg1 : i32, i32, i32
  }
  func.func @transform_1(%arg0: i32, %arg1: i32) -> (i32, i32) {
    %c0_i32 = arith.constant 0 : i32
    %c0_i32_0 = arith.constant 0 : i32
    %c0_i32_1 = arith.constant 0 : i32
    return %c0_i32, %c0_i32_0 : i32, i32
  }
  func.func @transform_2(%arg0: i32, %arg1: i32) -> (i32, i32) {
    %c0_i32 = arith.constant 0 : i32
    %c0_i32_0 = arith.constant 0 : i32
    %c0_i32_1 = arith.constant 0 : i32
    return %c0_i32, %c0_i32_0 : i32, i32
  }
  func.func @transform_3(%arg0: i32, %arg1: i32) -> (i32, i32, i32) {
    %c0_i32 = arith.constant 0 : i32
    %c0_i32_0 = arith.constant 0 : i32
    %c0_i32_1 = arith.constant 0 : i32
    return %arg0, %c0_i32, %c0_i32_0 : i32, i32, i32
  }
}

</mosaic_0001>

<llo_original>
// kernel: tpu_custom_call.1
$region0: #{tpu_custom_call.1}
  #allocation0 [shape = 'u32[]', space=smem, size = 0x4, offset = 0x4, fixed_abs, tag = 'smem constant byte address 0x4 - core index']
  #allocation1 [shape = 'u32[144,128]{1,0:T(1,128)}', space=vmem, size = 0x12000, scoped, tag = 'internal scratch']
  #allocation2 [shape = 'f32[2,8]{1,0:T(2,128)}', space=vmem, size = 0x400, scoped, tag = 'scratch operand']
  %s0 = inlined_call_operand.hbm [shape: f32[2,8,1024], index: 0, kind: input, shape index: {}]
  %s1 = inlined_call_operand.hbm [shape: f32[8,128], index: 1, kind: input, shape index: {}]
  %s2 = inlined_call_operand.vmem [shape: f32[1,128], index: 2, kind: input, shape index: {}]
  %s3 = inlined_call_operand.hbm [shape: f32[1,2,128], index: 3, kind: output, shape index: {}]
  %s4 = sld [smem:[#allocation0]]
  $region61: #{tpu_custom_call.1} parent=0
    _
  %s6 = ssub.s32 1, %s4
  %s7 = scalar_select 0, %s6, %s4
  $region1: #{tpu_custom_call.1} parent=0
    #allocation3 [shape = 'u8[49152]{0}', space=vmem, size = 0xc000, scoped, tag = 'input window, operand 0']
    #allocation4 [shape = 's32[2]{0}', space=sflag, size = 0x8, scoped, tag = 'scoped memory for tpu_custom_call.1']
    #allocation5 [shape = 's32[2]{0}', space=sflag, size = 0x8, scoped, tag = 'scoped memory for tpu_custom_call.1']
    #allocation6 [shape = 'u8[4096]{0}', space=vmem, size = 0x1000, scoped, tag = 'input window, operand 1, single buffered']
    #allocation7 [shape = 's32[1]{0}', space=sflag, size = 0x4, scoped, tag = 'scoped memory for tpu_custom_call.1']
    #allocation8 [shape = 'u8[1024]{0}', space=vmem, size = 0x400, scoped, tag = 'output window, operand 0, single buffered']
    %8 = vsyncpa [#allocation4], 0
    %s9 = scalar_lea.sflag [#allocation4], 1
    %10 = vsyncpa %s9, 0
    %11 = vsyncpa [#allocation7], 0
    %12 = vsyncpa [#allocation5], 0
    loop: start=0, step=1, limit=5
    $region2: #{tpu_custom_call.1} parent=1 // loop_pre_header
      _
    $region3: #{tpu_custom_call.1} parent=1 // loop_header
      %s14 = sphi 0, %s18
      %p15 = scmp.ge.s32.totalorder %s14, 5
      %s21 = sphi 0, %s33
      %s22 = sphi 0, %s29
      %s23 = sphi 0, %s21
      %s24 = sphi 0, %s22
      %s25 = sphi 0, %s23
      %s26 = sphi 0, %s24
      %s38 = sphi 0, %s40
      %s41 = sphi 0, %s38
      %s42 = sphi 0, %s41
      %s58 = sphi 0, %s42
      %s62 = sphi 0, %s62
      %s64 = sphi 0, %s62
      %s65 = sphi 0, %s64
      %s79 = sphi 0, %s65
      %s83 = sphi 0, %s83
      %s85 = sphi 0, %s83
      %s86 = sphi 0, %s85
      %s100 = sphi 0, %s86
      %s106 = sphi 0, %s108
      %s109 = sphi 0, %s106
      %s110 = sphi 0, %s109
      %s126 = sphi 0, %s110
    $region4: #{tpu_custom_call.1} parent=1 // loop_header_branch
      %17 = sbr.rel (%p15) target = $region8
    $region5: #{tpu_custom_call.1} parent=1 // loop_body
      %s19 = ssub.s32 %s14, 1
      %s20 = ssub.s32 %s14, 2
      %s27 = sadd.s32 1, %s22
      %p28 = scmp.ge.s32.totalorder %s27, 3
      %s29 = scalar_select %p28, 0, %s27
      %s30 = sadd.s32 1, %s21
      %s31 = scalar_select %p28, %s30, %s21
      %p32 = scmp.ge.s32.totalorder %s31, 1
      %s33 = scalar_select %p32, 0, %s31
      %s34 = ssub.s32 %s21, %s33
      %s35 = ssub.s32 %s22, %s29
      %s36 = sor.u32 %s34, %s35
      %p37 = scmp.eq.s32.totalorder %s36, 0
      %s39 = sadd.s32 %s38, 1
      %s40 = scalar_select %p37, %s38, %s39
      %p43 = pneg %p37
      %p44 = scmp.eq.s32.totalorder %s14, 2
      %p45 = por %p43, %p44
      %p46 = scmp.ne.s32.totalorder %s38, %s41
      %p47 = scmp.eq.s32.totalorder %s14, 0
      %p48 = por %p46, %p47
      %p49 = scmp.ne.s32.totalorder %s38, %s41
      %p50 = scmp.eq.s32.totalorder %s19, 2
      %p51 = por %p49, %p50
      %p52 = scmp.ne.s32.totalorder %s41, %s42
      %p53 = scmp.eq.s32.totalorder %s19, 0
      %p54 = por %p52, %p53
      %p55 = scmp.ne.s32.totalorder %s41, %s42
      %p56 = scmp.eq.s32.totalorder %s20, 2
      %p57 = por %p55, %p56
      %p59 = scmp.ne.s32.totalorder %s42, %s58
      %p60 = scmp.eq.s32.totalorder %s20, 0
      %p61 = por %p59, %p60
      %s63 = sadd.s32 %s62, 1
      %p66 = scmp.eq.s32.totalorder %s14, 2
      %p67 = scmp.ne.s32.totalorder %s62, %s64
      %p68 = scmp.eq.s32.totalorder %s14, 0
      %p69 = por %p67, %p68
      %p70 = scmp.ne.s32.totalorder %s62, %s64
      %p71 = scmp.eq.s32.totalorder %s19, 2
      %p72 = por %p70, %p71
      %p73 = scmp.ne.s32.totalorder %s64, %s65
      %p74 = scmp.eq.s32.totalorder %s19, 0
      %p75 = por %p73, %p74
      %p76 = scmp.ne.s32.totalorder %s64, %s65
      %p77 = scmp.eq.s32.totalorder %s20, 2
      %p78 = por %p76, %p77
      %p80 = scmp.ne.s32.totalorder %s65, %s79
      %p81 = scmp.eq.s32.totalorder %s20, 0
      %p82 = por %p80, %p81
      %s84 = sadd.s32 %s83, 1
      %p87 = scmp.eq.s32.totalorder %s14, 2
      %p88 = scmp.ne.s32.totalorder %s83, %s85
      %p89 = scmp.eq.s32.totalorder %s14, 0
      %p90 = por %p88, %p89
      %p91 = scmp.ne.s32.totalorder %s83, %s85
      %p92 = scmp.eq.s32.totalorder %s19, 2
      %p93 = por %p91, %p92
      %p94 = scmp.ne.s32.totalorder %s85, %s86
      %p95 = scmp.eq.s32.totalorder %s19, 0
      %p96 = por %p94, %p95
      %p97 = scmp.ne.s32.totalorder %s85, %s86
      %p98 = scmp.eq.s32.totalorder %s20, 2
      %p99 = por %p97, %p98
      %p101 = scmp.ne.s32.totalorder %s86, %s100
      %p102 = scmp.eq.s32.totalorder %s20, 0
      %p103 = por %p101, %p102
      %s104 = ssub.s32 %s21, %s33
      %p105 = scmp.eq.s32.totalorder %s104, 0
      %s107 = sadd.s32 %s106, 1
      %s108 = scalar_select %p105, %s106, %s107
      %p111 = pneg %p105
      %p112 = scmp.eq.s32.totalorder %s14, 2
      %p113 = por %p111, %p112
      %p114 = scmp.ne.s32.totalorder %s106, %s109
      %p115 = scmp.eq.s32.totalorder %s14, 0
      %p116 = por %p114, %p115
      %p117 = scmp.ne.s32.totalorder %s106, %s109
      %p118 = scmp.eq.s32.totalorder %s19, 2
      %p119 = por %p117, %p118
      %p120 = scmp.ne.s32.totalorder %s109, %s110
      %p121 = scmp.eq.s32.totalorder %s19, 0
      %p122 = por %p120, %p121
      %p123 = scmp.ne.s32.totalorder %s109, %s110
      %p124 = scmp.eq.s32.totalorder %s20, 2
      %p125 = por %p123, %p124
      %p127 = scmp.ne.s32.totalorder %s110, %s126
      %p128 = scmp.eq.s32.totalorder %s20, 0
      %p129 = por %p127, %p128
      %p130 = scmp.le.s32.totalorder 1, %s14
      %p131 = scmp.lt.s32.totalorder %s14, 4
      %p132 = pnand %p130, %p131
      %p133 = pneg %p132
      // Predicated region
      $region9: #{tpu_custom_call.1} parent=5 // pred_check
        _
      $region10: #{tpu_custom_call.1} parent=5 // pred_check_branch
        %135 = sbr.rel (%p132) target = $region12
      $region11: #{tpu_custom_call.1} parent=5 // pred_region
        %s136 = ssub.s32 %s14, 1
        // Predicated region
        $region13: #{tpu_custom_call.1} parent=11 // pred_check
          %p137 = pneg %p75
        $region14: #{tpu_custom_call.1} parent=11 // pred_check_branch
          %139 = sbr.rel (%p137) target = $region16
        $region15: #{tpu_custom_call.1} parent=11 // pred_region
          %s141 = ssub.s32 128, 128
          %142 = vsyncadd [#allocation7], %s141
          %s144 = sshll.u32 [#allocation6], 4
          %s145 = int_to_ptr.vmem [resolvable:$true] %s144
          %147 = dma.hbm_to_vmem [thread:$0]  %s1, 128, %s145, [#allocation7]
        $region16: #{tpu_custom_call.1} parent=11 // pred_fallthru
          _
        // Predicated region
        $region17: #{tpu_custom_call.1} parent=11 // pred_check
          %p148 = pneg %p96
        $region18: #{tpu_custom_call.1} parent=11 // pred_check_branch
          %150 = sbr.rel (%p148) target = $region20
        $region19: #{tpu_custom_call.1} parent=11 // pred_region
          _
        $region20: #{tpu_custom_call.1} parent=11 // pred_fallthru
          _
      $region12: #{tpu_custom_call.1} parent=5 // pred_fallthru
        _
      %p151 = scmp.lt.s32.totalorder %s14, 3
      // Predicated region
      $region21: #{tpu_custom_call.1} parent=5 // pred_check
        %p152 = pneg %p151
      $region22: #{tpu_custom_call.1} parent=5 // pred_check_branch
        %154 = sbr.rel (%p152) target = $region24
      $region23: #{tpu_custom_call.1} parent=5 // pred_region
        // Predicated region
        $region25: #{tpu_custom_call.1} parent=23 // pred_check
          %p155 = pneg %p48
        $region26: #{tpu_custom_call.1} parent=23 // pred_check_branch
          %157 = sbr.rel (%p155) target = $region28
        $region27: #{tpu_custom_call.1} parent=23 // pred_region
          %s158 = sand.u32 %s38, 1
          %s159 = scalar_lea.sflag [#allocation4], %s158
          %s160 = sand.u32 %s38, 1
          %s161 = smul.addr %s160, 48
          %s162 = scalar_lea.vmem [#allocation3], %s161
          %s163 = smul.u32 2, %s21
          %s164 = smul.u32 3, %s22
          %s165 = ssub.s32 8, %s164
          %p166 = scmp.lt.s32.totalorder %s165, 3
          %s167 = scalar_select %p166, %s165, 3
          %s168 = smul.u32 256, %s167
          %s170 = ssub.s32 768, %s168
          %171 = vsyncadd %s159, %s170
          %p172 = scmp.ne.s32.totalorder 0, %s168
          %s173 = smul.addr %s163, 8
          %s174 = sadd.s32 %s164, %s173
          %s175 = smul.addr %s174, 128
          %s176 = scalar_lea.hbm %s0, %s175
          %s177 = smul.u32 %s167, 8
          %s178 = smul.u32 %s177, 2
          %s179 = sshll.u32 %s162, 4
          %s180 = int_to_ptr.vmem [resolvable:$true] %s179
          %s181 = sshll.u32 %s178, 4
          %185 = dma.hbm_to_vmem [thread:$0]  (%p172), %s176, %s181, %s180, %s159, 1024, 384, %s177
        $region28: #{tpu_custom_call.1} parent=23 // pred_fallthru
          _
      $region24: #{tpu_custom_call.1} parent=5 // pred_fallthru
        _
      %p186 = scmp.le.s32.totalorder 1, %s14
      %p187 = scmp.lt.s32.totalorder %s14, 4
      %p188 = pnand %p186, %p187
      %p189 = pneg %p188
      // Predicated region
      $region29: #{tpu_custom_call.1} parent=5 // pred_check
        _
      $region30: #{tpu_custom_call.1} parent=5 // pred_check_branch
        %191 = sbr.rel (%p188) target = $region32
      $region31: #{tpu_custom_call.1} parent=5 // pred_region
        %s192 = ssub.s32 %s14, 1
        %s193 = sand.u32 %s41, 1
        %s194 = scalar_lea.sflag [#allocation4], %s193
        %s195 = sand.u32 %s41, 1
        %s196 = smul.addr %s195, 48
        %s197 = scalar_lea.vmem [#allocation3], %s196
        // Predicated region
        $region33: #{tpu_custom_call.1} parent=31 // pred_check
          %p198 = pneg %p54
        $region34: #{tpu_custom_call.1} parent=31 // pred_check_branch
          %200 = sbr.rel (%p198) target = $region36
        $region35: #{tpu_custom_call.1} parent=31 // pred_region
          %201 = dma.done %s194, 768
        $region36: #{tpu_custom_call.1} parent=31 // pred_fallthru
          _
        // Predicated region
        $region37: #{tpu_custom_call.1} parent=31 // pred_check
          %p202 = pneg %p75
        $region38: #{tpu_custom_call.1} parent=31 // pred_check_branch
          %204 = sbr.rel (%p202) target = $region40
        $region39: #{tpu_custom_call.1} parent=31 // pred_region
          %205 = dma.done [#allocation7], 128
        $region40: #{tpu_custom_call.1} parent=31 // pred_fallthru
          _
        %s206 = sand.u32 %s41, 1
        %s207 = scalar_lea.sflag [#allocation4], %s206
        %s208 = sand.u32 %s41, 1
        %s209 = smul.addr %s208, 48
        %s210 = scalar_lea.vmem [#allocation3], %s209
        %p211 = pneg %p54
        %p212 = pneg %p51
        %p213 = pneg %p75
        %p214 = pneg %p72
        %p215 = pneg %p96
        %p216 = pneg %p93
        %p217 = pneg %p122
        %p218 = pneg %p119
        %s219 = smul.u32 2, %s23
        %s220 = smul.u32 3, %s24
        %s221 = ssub.s32 8, %s220
        %p222 = scmp.lt.s32.totalorder %s221, 3
        %s223 = scalar_select %p222, %s221, 3
        %s224 = smul.u32 256, %s223
        %p225 = scmp.eq.s32.totalorder %s24, 0
        // Predicated region
        $region41: #{tpu_custom_call.1} parent=31 // pred_check
          %p226 = pneg %p225
        $region42: #{tpu_custom_call.1} parent=31 // pred_check_branch
          %228 = sbr.rel (%p226) target = $region44
        $region43: #{tpu_custom_call.1} parent=31 // pred_region
          %vm229 = vcmask 58368
          %230 = vst.msk [vmem:[#allocation2] sm:$0x3] %vm229, 0.0
        $region44: #{tpu_custom_call.1} parent=31 // pred_fallthru
          _
        %v231 = vld [vmem:[%s197] sm:$0xff]
        %v232 = vld [vmem:[%s197 + $0x8] sm:$0xff]
        %v233 = vld [vmem:[%s197 + $0x10] sm:$0xff]
        %v234 = vld [vmem:[%s197 + $0x18] sm:$0xff]
        %v235 = vld [vmem:[%s197 + $0x20] sm:$0xff]
        %v236 = vld [vmem:[%s197 + $0x28] sm:$0xff]
        %p237 = scmp.eq.s32.totalorder %s24, 2
        %s238 = scalar_select %p237, 256, 384
        %v239 = vlaneseq
        %v240 = vand.u32 %v239, 127
        %v241 = vadd.s32 %v240, 128
        %v242 = vadd.s32 %v240, 256
        %v243 = vstv %s238
        %vm244 = vcmp.lt.s32.totalorder %v240, %v243
        %vm245 = vcmp.lt.s32.totalorder %v241, %v243
        %vm246 = vcmp.lt.s32.totalorder %v242, %v243
        %v247 = vsel %vm244, %v231, 0.0
        %v248 = vsel %vm245, %v232, 0.0
        %v249 = vsel %vm246, %v233, 0.0
        %v250 = vsel %vm244, %v234, 0.0
        %v251 = vsel %vm245, %v235, 0.0
        %v252 = vsel %vm246, %v236, 0.0
        %v253 = vld [vmem:[#allocation2] sm:$0x3]
        %v254 = vadd.f32 %v247, %v248
        %v255 = vadd.f32 %v254, %v249
        %256 = vadd.xlane.f32.xlu0 %v255
        %v257 = vpop.xlane.xlu0 %256
        %v258 = vadd.f32 %v250, %v251
        %v259 = vadd.f32 %v258, %v252
        %260 = vadd.xlane.f32.xlu0 %v259
        %v261 = vpop.xlane.xlu0 %260
        %v264 = vlaneseq
        %v265 = vshrl.u32 %v264, 7
        %v266 = vsub.s32 %v240, %v265
        %v267 = vrot.slane %v257, %v266
        %v268 = vlaneseq
        %v269 = vshrl.u32 %v268, 7
        %v270 = vsub.s32 %v240, %v269
        %v271 = vrot.slane %v261, %v270
        %vm272 = vcmask 1041409
        %v273 = vsel %vm272, %v271, %v267
        %v275 = vadd.f32 %v253, %v273
        %vm276 = vcmask 58368
        %277 = vst.msk [vmem:[#allocation2] sm:$0x3] %vm276, %v275
        // Predicated region
        $region45: #{tpu_custom_call.1} parent=31 // pred_check
          %p278 = pneg %p237
        $region46: #{tpu_custom_call.1} parent=31 // pred_check_branch
          %280 = sbr.rel (%p278) target = $region48
        $region47: #{tpu_custom_call.1} parent=31 // pred_region
          %v281 = vld [vmem:[#allocation2] sm:$0x3]
          %v282 = vmul.f32 %v281, 0.0009765625
          %v283 = vld [vmem:[#allocation6] sm:$0xff]
          %v284 = vld [vmem:[%s2] sm:$0x1]
          %v286 = vlaneseq
          %v287 = vshrl.u32 %v286, 7
          %v288 = vsub.s32 0, %v287
          %v289 = vrot.slane %v284, %v288
          %vm291 = vcmask 64512
          %v293 = vsel %vm291, %v282, 0
          %295 = vmatprep.subr.mxu0 0.0
          %296 = vmatpush1.msra.mxu0 0.0
          %297 = vmatprep.subr.mxu0 0.0
          %298 = vmatpush1.msra.mxu0 0.0
          %299 = vmatprep.subr.mxu0 0.0
          %300 = vmatpush1.msra.mxu0 0.0
          %301 = vmatprep.subr.mxu0 0.0
          %302 = vmatpush1.msra.mxu0 0.0
          %303 = vmatprep.subr.mxu0 0.0
          %304 = vmatpush1.msra.mxu0 0.0
          %305 = vmatprep.subr.mxu0 0.0
          %306 = vmatpush1.msra.mxu0 0.0
          %307 = vmatprep.subr.mxu0 0.0
          %308 = vmatpush1.msra.mxu0 0.0
          %309 = vmatprep.subr.mxu0 0.0
          %310 = vmatpush1.msra.mxu0 0.0
          %311 = vmatprep.subr.mxu0 0.0
          %312 = vmatpush1.msra.mxu0 0.0
          %313 = vmatprep.subr.mxu0 0.0
          %314 = vmatpush1.msra.mxu0 0.0
          %315 = vmatprep.subr.mxu0 0.0
          %316 = vmatpush1.msra.mxu0 0.0
          %317 = vmatprep.subr.mxu0 0.0
          %318 = vmatpush1.msra.mxu0 0.0
          %319 = vmatprep.subr.mxu0 0.0
          %320 = vmatpush1.msra.mxu0 0.0
          %321 = vmatprep.subr.mxu0 0.0
          %322 = vmatpush1.msra.mxu0 0.0
          %323 = vmatprep.subr.mxu0 0.0
          %324 = vmatpush1.msra.mxu0 0.0
          %325 = vmatprep.subr.mxu0 0.0
          %326 = vmatpush1.msra.mxu0 %v283
          %327 = vmatprep.subr.mxu0 0.0
          %328 = vmatpush2.msra.mxu0 0.0
          %329 = vmatprep.subr.mxu0 0.0
          %330 = vmatpush2.msra.mxu0 0.0
          %331 = vmatprep.subr.mxu0 0.0
          %332 = vmatpush2.msra.mxu0 0.0
          %333 = vmatprep.subr.mxu0 0.0
          %334 = vmatpush2.msra.mxu0 0.0
          %335 = vmatprep.subr.mxu0 0.0
          %336 = vmatpush2.msra.mxu0 0.0
          %337 = vmatprep.subr.mxu0 0.0
          %338 = vmatpush2.msra.mxu0 0.0
          %339 = vmatprep.subr.mxu0 0.0
          %340 = vmatpush2.msra.mxu0 0.0
          %341 = vmatprep.subr.mxu0 0.0
          %342 = vmatpush2.msra.mxu0 0.0
          %343 = vmatprep.subr.mxu0 0.0
          %344 = vmatpush2.msra.mxu0 0.0
          %345 = vmatprep.subr.mxu0 0.0
          %346 = vmatpush2.msra.mxu0 0.0
          %347 = vmatprep.subr.mxu0 0.0
          %348 = vmatpush2.msra.mxu0 0.0
          %349 = vmatprep.subr.mxu0 0.0
          %350 = vmatpush2.msra.mxu0 0.0
          %351 = vmatprep.subr.mxu0 0.0
          %352 = vmatpush2.msra.mxu0 0.0
          %353 = vmatprep.subr.mxu0 0.0
          %354 = vmatpush2.msra.mxu0 0.0
          %355 = vmatprep.subr.mxu0 0.0
          %356 = vmatpush2.msra.mxu0 0.0
          %357 = vmatprep.subr.mxu0 0.0
          %358 = vmatpush2.msra.mxu0 0.0
          %359 = vmatprep.mubr.f32.mxu0 0.0
          %360 = vmatmul.mubr.f32.gmra.mxu0 %v293
          %v361 = vpop.f32.mrf.mxu0
          %v362 = vadd.f32 %v289, %v361
          %v363 = vpop.f32.mrf.mxu0
          %364 = vdwg.mxu0
          %365 = vst [vmem:[#allocation8] sm:$0x3] %v362
        $region48: #{tpu_custom_call.1} parent=31 // pred_fallthru
          _
        // Predicated region
        $region49: #{tpu_custom_call.1} parent=31 // pred_check
          %p366 = pneg %p119
        $region50: #{tpu_custom_call.1} parent=31 // pred_check_branch
          %368 = sbr.rel (%p366) target = $region52
        $region51: #{tpu_custom_call.1} parent=31 // pred_region
          %s370 = ssub.s32 32, 32
          %371 = vsyncadd [#allocation5], %s370
          %s372 = smul.addr %s23, 32
          %s373 = scalar_lea.hbm %s3, %s372
          %s375 = sshll.u32 [#allocation8], 4
          %s376 = int_to_ptr.vmem [resolvable:$true] %s375
          %378 = dma.vmem_to_hbm [thread:$0]  %s376, 32, %s373, [#allocation5]
        $region52: #{tpu_custom_call.1} parent=31 // pred_fallthru
          _
        // Predicated region
        $region53: #{tpu_custom_call.1} parent=31 // pred_check
          %p379 = pneg %p119
        $region54: #{tpu_custom_call.1} parent=31 // pred_check_branch
          %381 = sbr.rel (%p379) target = $region56
        $region55: #{tpu_custom_call.1} parent=31 // pred_region
          %382 = dma.done [#allocation5], 32
        $region56: #{tpu_custom_call.1} parent=31 // pred_fallthru
          _
      $region32: #{tpu_custom_call.1} parent=5 // pred_fallthru
        _
      %p383 = scmp.le.s32.totalorder 2, %s14
      // Predicated region
      $region57: #{tpu_custom_call.1} parent=5 // pred_check
        %p384 = pneg %p383
      $region58: #{tpu_custom_call.1} parent=5 // pred_check_branch
        %386 = sbr.rel (%p384) target = $region60
      $region59: #{tpu_custom_call.1} parent=5 // pred_region
        %s387 = ssub.s32 %s14, 2
      $region60: #{tpu_custom_call.1} parent=5 // pred_fallthru
        _
    $region6: #{tpu_custom_call.1} parent=1 // loop_footer
      %s18 = sadd.s32 1, %s14
    $region7: #{tpu_custom_call.1} parent=1 // loop_footer_branch
      %13 = sbr.rel target = $region3
    $region8: #{tpu_custom_call.1} parent=1 // loop_exit
      _
    %388 = vsyncpa [#allocation4], 1
    %s389 = scalar_lea.sflag [#allocation4], 1
    %390 = vsyncpa %s389, 1
    %391 = vsyncpa [#allocation7], 1
    %392 = vsyncpa [#allocation5], 1
    %s393 = scalar_lea.sflag [#allocation5], 1
    %394 = vsyncpa %s393, 1

</llo_original>
